<compile_context>
chip_gen: v5e
topology: v5e:2x2
jax: 0.10.0
libtpu: 0.0.40
codegen_flags: <defaults>
</compile_context>

<pallas_src>
import jax
import jax.numpy as jnp
from jax.experimental import pallas as pl
from jax.experimental.pallas import tpu as pltpu

H = 8        # hidden width from set_model: (d_out, h) = (1, 8)
D_OUT = 1


def _round_up(x, m):
    return ((x + m - 1) // m) * m


def _multitask_kernel(xm_ref, xs_ref, xb_ref,
                      w1a_ref, w1b_ref, b1_ref,
                      w2_ref, b2_ref, w3_ref, b3_ref, w4_ref, b4_ref,
                      w5_ref, b5_ref,
                      wb1_ref, bb1_ref, wb2_ref, bb2_ref,
                      out_ref):
    f32 = jnp.float32

    # Upcast bf16 activations once; all math (MXU accumulate + tanh/sigmoid)
    # stays in f32 so the kernel is portable to v5e (no bf16 VPU/EUP).
    xm = xm_ref[...].astype(f32)
    xs = xs_ref[...].astype(f32)
    xb = xb_ref[...].astype(f32)

    # ---------------- ranker branch ----------------
    # First layer: split-weight form of concat([multi, single]) @ w1 + b1.
    h = jnp.tanh(jnp.dot(xm, w1a_ref[...], preferred_element_type=f32)
                 + jnp.dot(xs, w1b_ref[...], preferred_element_type=f32)
                 + b1_ref[...])
    # Dropout(p=0.5) -> identity (eval mode)
    h = jnp.tanh(jnp.dot(h, w2_ref[...], preferred_element_type=f32) + b2_ref[...])
    h = jnp.tanh(jnp.dot(h, w3_ref[...], preferred_element_type=f32) + b3_ref[...])
    h = jnp.tanh(jnp.dot(h, w4_ref[...], preferred_element_type=f32) + b4_ref[...])
    yrank = jnp.dot(h, w5_ref[...], preferred_element_type=f32) + b5_ref[...]

    # ---------------- binary branch ----------------
    hb = jnp.tanh(jnp.dot(xb, wb1_ref[...], preferred_element_type=f32) + bb1_ref[...])
    ybin = jax.nn.sigmoid(
        jnp.dot(hb, wb2_ref[...], preferred_element_type=f32) + bb2_ref[...])

    # Fused lane-packed output: col 0 = y_bin, col 1 = y_rank (single store).
    out_ref[...] = jnp.concatenate([ybin, yrank], axis=-1).astype(out_ref.dtype)


def multitask_forward(multi, single, hashtag, params, *,
                      block_b=4096, cast_bf16=True):
    """Runs the multitask ranker forward pass in a single Pallas kernel.

    multi:   (B, d_multi)  float
    single:  (B, d_single) float
    hashtag: (B, d_bin)    float
    params:  (w1,b1,w2,b2,w3,b3,w4,b4,w5,b5,wb1,bb1,wb2,bb2) with
             w1: (d_multi + d_single, 8).
    Returns (y_bin, y_rank), each (B, 1) float32.
    """
    (w1, b1, w2, b2, w3, b3, w4, b4, w5, b5, wb1, bb1, wb2, bb2) = [
        jnp.asarray(p, jnp.float32) for p in params]

    B, d_multi = multi.shape
    d_single = single.shape[1]
    d_bin = hashtag.shape[1]

    # Split the first ranker weight so we never materialize the concat.
    w1a = w1[:d_multi, :]
    w1b = w1[d_multi:d_multi + d_single, :]

    act_dtype = jnp.bfloat16 if cast_bf16 else jnp.float32

    # Batch tile: multiple of 8 sublanes; pad B up to a multiple of it.
    tb = min(block_b, _round_up(max(B, 1), 8))
    bp = _round_up(max(B, 1), tb)
    n_blocks = bp // tb

    def prep(x):
        x = x.astype(act_dtype)
        if bp != B:
            x = jnp.pad(x, ((0, bp - B), (0, 0)))
        return x

    xm, xs, xb = prep(multi), prep(single), prep(hashtag)

    weights = (w1a, w1b, b1, w2, b2, w3, b3, w4, b4, w5, b5,
               wb1, bb1, wb2, bb2)

    act_spec = lambda d: pl.BlockSpec((tb, d), lambda i: (i, 0))
    const_spec = lambda a: pl.BlockSpec(a.shape, lambda i: (0,) * a.ndim)

    in_specs = ([act_spec(d_multi), act_spec(d_single), act_spec(d_bin)]
                + [const_spec(w) for w in weights])

    fused = pl.pallas_call(
        _multitask_kernel,
        grid=(n_blocks,),
        in_specs=in_specs,
        out_specs=pl.BlockSpec((tb, 2), lambda i: (i, 0)),
        out_shape=jax.ShapeDtypeStruct((bp, 2), jnp.float32),
        compiler_params=pltpu.CompilerParams(
            dimension_semantics=("parallel",)),
    )(xm, xs, xb, *weights)

    y_bin = fused[:B, 0:D_OUT]
    y_rank = fused[:B, D_OUT:2 * D_OUT]
    return y_bin, y_rank


def init_params(key, dimen_ranker, dimen_bin):
    """Deterministic init mimicking torch.nn.Linear default (U(-1/sqrt(fan_in), +))."""
    def linear(k, fan_in, fan_out):
        kw, kb = jax.random.split(k)
        bound = 1.0 / jnp.sqrt(jnp.float32(fan_in))
        w = jax.random.uniform(kw, (fan_in, fan_out), jnp.float32, -bound, bound)
        b = jax.random.uniform(kb, (1, fan_out), jnp.float32, -bound, bound)
        return w, b

    keys = jax.random.split(key, 7)
    # ranker: dimen_ranker -> 8 -> 8 -> 8 -> 8 -> 1
    w1, b1 = linear(keys[0], dimen_ranker, H)
    w2, b2 = linear(keys[1], H, H)
    w3, b3 = linear(keys[2], H, H)
    w4, b4 = linear(keys[3], H, H)
    w5, b5 = linear(keys[4], H, D_OUT)
    # binary: dimen_bin -> 8 -> 1
    wb1, bb1 = linear(keys[5], dimen_bin, H)
    wb2, bb2 = linear(keys[6], H, D_OUT)
    return (w1, b1, w2, b2, w3, b3, w4, b4, w5, b5, wb1, bb1, wb2, bb2)


def reference_forward(multi, single, hashtag, params):
    """Pure-JAX reference for correctness checking (mirrors the PyTorch model)."""
    (w1, b1, w2, b2, w3, b3, w4, b4, w5, b5, wb1, bb1, wb2, bb2) = params
    xr = jnp.concatenate([multi, single], axis=-1)
    h = jnp.tanh(xr @ w1 + b1)
    h = jnp.tanh(h @ w2 + b2)
    h = jnp.tanh(h @ w3 + b3)
    h = jnp.tanh(h @ w4 + b4)
    y_rank = h @ w5 + b5
    hb = jnp.tanh(hashtag @ wb1 + bb1)
    y_bin = jax.nn.sigmoid(hb @ wb2 + bb2)
    return y_bin, y_rank


if __name__ == "__main__":
    key = jax.random.PRNGKey(0)
    k_multi, k_single, k_hash, k_params = jax.random.split(key, 4)

    B = 8            # batch of candidate pairs
    d_multi = 12     # multi-word pairwise features
    d_single = 4     # single-word pairwise features
    d_bin = 8        # hashtag features for the auxiliary binary task
    dimen_ranker = d_multi + d_single   # 16
    dimen_bin = d_bin                   # 8

    multi = jax.random.normal(k_multi, (B, d_multi), jnp.float32)
    single = jax.random.normal(k_single, (B, d_single), jnp.float32)
    hashtag = jax.random.normal(k_hash, (B, d_bin), jnp.float32)

    params = init_params(k_params, dimen_ranker, dimen_bin)

    y_bin, y_rank = multitask_forward(multi, single, hashtag, params)
    jax.block_until_ready((y_bin, y_rank))

    # Reference on the same bf16-rounded activations the kernel consumes.
    rnd = lambda x: x.astype(jnp.bfloat16).astype(jnp.float32)
    ref_bin, ref_rank = reference_forward(rnd(multi), rnd(single), rnd(hashtag), params)

    assert y_bin.shape == (B, 1) and y_rank.shape == (B, 1)
    assert jnp.allclose(y_bin, ref_bin, atol=1e-4, rtol=1e-4)
    assert jnp.allclose(y_rank, ref_rank, atol=1e-4, rtol=1e-4)

    print("KERNEL_OK")
</pallas_src>

<mosaic_0001>
module attributes {stable_mosaic.version = 11 : i64} {
  func.func @_multitask_kernel(%arg0: i32, %arg1: memref<8x12xbf16, #tpu.memory_space<vmem>>, %arg2: memref<8x4xbf16, #tpu.memory_space<vmem>>, %arg3: memref<8x8xbf16, #tpu.memory_space<vmem>>, %arg4: memref<12x8xf32, #tpu.memory_space<vmem>>, %arg5: memref<4x8xf32, #tpu.memory_space<vmem>>, %arg6: memref<1x8xf32, #tpu.memory_space<vmem>>, %arg7: memref<8x8xf32, #tpu.memory_space<vmem>>, %arg8: memref<1x8xf32, #tpu.memory_space<vmem>>, %arg9: memref<8x8xf32, #tpu.memory_space<vmem>>, %arg10: memref<1x8xf32, #tpu.memory_space<vmem>>, %arg11: memref<8x8xf32, #tpu.memory_space<vmem>>, %arg12: memref<1x8xf32, #tpu.memory_space<vmem>>, %arg13: memref<8x1xf32, #tpu.memory_space<vmem>>, %arg14: memref<1x1xf32, #tpu.memory_space<vmem>>, %arg15: memref<8x8xf32, #tpu.memory_space<vmem>>, %arg16: memref<1x8xf32, #tpu.memory_space<vmem>>, %arg17: memref<8x1xf32, #tpu.memory_space<vmem>>, %arg18: memref<1x1xf32, #tpu.memory_space<vmem>>, %arg19: memref<8x2xf32, #tpu.memory_space<vmem>>) attributes {dimension_semantics = [#tpu.dimension_semantics<parallel>], iteration_bounds = array<i64: 1>, scalar_prefetch = 0 : i64, scratch_operands = 0 : i64, tpu.core_type = #tpu.core_type<tc>, window_params = [{transform_indices = @transform_0, window_bounds = array<i64: 8, 12>}, {transform_indices = @transform_1, window_bounds = array<i64: 8, 4>}, {transform_indices = @transform_2, window_bounds = array<i64: 8, 8>}, {pipeline_mode = #tpu.pipeline_mode<synchronous>, transform_indices = @transform_3, window_bounds = array<i64: 12, 8>}, {pipeline_mode = #tpu.pipeline_mode<synchronous>, transform_indices = @transform_4, window_bounds = array<i64: 4, 8>}, {pipeline_mode = #tpu.pipeline_mode<synchronous>, transform_indices = @transform_5, window_bounds = array<i64: 1, 8>}, {pipeline_mode = #tpu.pipeline_mode<synchronous>, transform_indices = @transform_6, window_bounds = array<i64: 8, 8>}, {pipeline_mode = #tpu.pipeline_mode<synchronous>, transform_indices = @transform_7, window_bounds = array<i64: 1, 8>}, {pipeline_mode = #tpu.pipeline_mode<synchronous>, transform_indices = @transform_8, window_bounds = array<i64: 8, 8>}, {pipeline_mode = #tpu.pipeline_mode<synchronous>, transform_indices = @transform_9, window_bounds = array<i64: 1, 8>}, {pipeline_mode = #tpu.pipeline_mode<synchronous>, transform_indices = @transform_10, window_bounds = array<i64: 8, 8>}, {pipeline_mode = #tpu.pipeline_mode<synchronous>, transform_indices = @transform_11, window_bounds = array<i64: 1, 8>}, {pipeline_mode = #tpu.pipeline_mode<synchronous>, transform_indices = @transform_12, window_bounds = array<i64: 8, 1>}, {pipeline_mode = #tpu.pipeline_mode<synchronous>, transform_indices = @transform_13, window_bounds = array<i64: 1, 1>}, {pipeline_mode = #tpu.pipeline_mode<synchronous>, transform_indices = @transform_14, window_bounds = array<i64: 8, 8>}, {pipeline_mode = #tpu.pipeline_mode<synchronous>, transform_indices = @transform_15, window_bounds = array<i64: 1, 8>}, {pipeline_mode = #tpu.pipeline_mode<synchronous>, transform_indices = @transform_16, window_bounds = array<i64: 8, 1>}, {pipeline_mode = #tpu.pipeline_mode<synchronous>, transform_indices = @transform_17, window_bounds = array<i64: 1, 1>}, {transform_indices = @transform_18, window_bounds = array<i64: 8, 2>}]} {
    %c0 = arith.constant 0 : index
    %c0_0 = arith.constant 0 : index
    %0 = vector.load %arg1[%c0, %c0_0] : memref<8x12xbf16, #tpu.memory_space<vmem>>, vector<8x12xbf16>
    %1 = arith.extf %0 : vector<8x12xbf16> to vector<8x12xf32>
    %c0_1 = arith.constant 0 : index
    %c0_2 = arith.constant 0 : index
    %2 = vector.load %arg2[%c0_1, %c0_2] : memref<8x4xbf16, #tpu.memory_space<vmem>>, vector<8x4xbf16>
    %3 = arith.extf %2 : vector<8x4xbf16> to vector<8x4xf32>
    %c0_3 = arith.constant 0 : index
    %c0_4 = arith.constant 0 : index
    %4 = vector.load %arg3[%c0_3, %c0_4] : memref<8x8xbf16, #tpu.memory_space<vmem>>, vector<8x8xbf16>
    %5 = arith.extf %4 : vector<8x8xbf16> to vector<8x8xf32>
    %c0_5 = arith.constant 0 : index
    %c0_6 = arith.constant 0 : index
    %6 = vector.load %arg4[%c0_5, %c0_6] : memref<12x8xf32, #tpu.memory_space<vmem>>, vector<12x8xf32>
    %cst = arith.constant dense<0.000000e+00> : vector<8x8xf32>
    %7 = tpu.matmul %1, %6, %cst {dimension_numbers = #tpu.dot_dimension_numbers<[1], [0], [0], [1], [0, 0, 1, 1], [], []>} : vector<8x12xf32>, vector<12x8xf32>, vector<8x8xf32> -> vector<8x8xf32>
    %c0_7 = arith.constant 0 : index
    %c0_8 = arith.constant 0 : index
    %8 = vector.load %arg5[%c0_7, %c0_8] : memref<4x8xf32, #tpu.memory_space<vmem>>, vector<4x8xf32>
    %cst_9 = arith.constant dense<0.000000e+00> : vector<8x8xf32>
    %9 = tpu.matmul %3, %8, %cst_9 {dimension_numbers = #tpu.dot_dimension_numbers<[1], [0], [0], [1], [0, 0, 1, 1], [], []>} : vector<8x4xf32>, vector<4x8xf32>, vector<8x8xf32> -> vector<8x8xf32>
    %10 = arith.addf %7, %9 : vector<8x8xf32>
    %c0_10 = arith.constant 0 : index
    %c0_11 = arith.constant 0 : index
    %11 = vector.load %arg6[%c0_10, %c0_11] : memref<1x8xf32, #tpu.memory_space<vmem>>, vector<1x8xf32>
    %12 = vector.broadcast %11 : vector<1x8xf32> to vector<8x8xf32>
    %13 = arith.addf %10, %12 : vector<8x8xf32>
    %14 = math.tanh %13 : vector<8x8xf32>
    %c0_12 = arith.constant 0 : index
    %c0_13 = arith.constant 0 : index
    %15 = vector.load %arg7[%c0_12, %c0_13] : memref<8x8xf32, #tpu.memory_space<vmem>>, vector<8x8xf32>
    %cst_14 = arith.constant dense<0.000000e+00> : vector<8x8xf32>
    %16 = tpu.matmul %14, %15, %cst_14 {dimension_numbers = #tpu.dot_dimension_numbers<[1], [0], [0], [1], [0, 0, 1, 1], [], []>} : vector<8x8xf32>, vector<8x8xf32>, vector<8x8xf32> -> vector<8x8xf32>
    %c0_15 = arith.constant 0 : index
    %c0_16 = arith.constant 0 : index
    %17 = vector.load %arg8[%c0_15, %c0_16] : memref<1x8xf32, #tpu.memory_space<vmem>>, vector<1x8xf32>
    %18 = vector.broadcast %17 : vector<1x8xf32> to vector<8x8xf32>
    %19 = arith.addf %16, %18 : vector<8x8xf32>
    %20 = math.tanh %19 : vector<8x8xf32>
    %c0_17 = arith.constant 0 : index
    %c0_18 = arith.constant 0 : index
    %21 = vector.load %arg9[%c0_17, %c0_18] : memref<8x8xf32, #tpu.memory_space<vmem>>, vector<8x8xf32>
    %cst_19 = arith.constant dense<0.000000e+00> : vector<8x8xf32>
    %22 = tpu.matmul %20, %21, %cst_19 {dimension_numbers = #tpu.dot_dimension_numbers<[1], [0], [0], [1], [0, 0, 1, 1], [], []>} : vector<8x8xf32>, vector<8x8xf32>, vector<8x8xf32> -> vector<8x8xf32>
    %c0_20 = arith.constant 0 : index
    %c0_21 = arith.constant 0 : index
    %23 = vector.load %arg10[%c0_20, %c0_21] : memref<1x8xf32, #tpu.memory_space<vmem>>, vector<1x8xf32>
    %24 = vector.broadcast %23 : vector<1x8xf32> to vector<8x8xf32>
    %25 = arith.addf %22, %24 : vector<8x8xf32>
    %26 = math.tanh %25 : vector<8x8xf32>
    %c0_22 = arith.constant 0 : index
    %c0_23 = arith.constant 0 : index
    %27 = vector.load %arg11[%c0_22, %c0_23] : memref<8x8xf32, #tpu.memory_space<vmem>>, vector<8x8xf32>
    %cst_24 = arith.constant dense<0.000000e+00> : vector<8x8xf32>
    %28 = tpu.matmul %26, %27, %cst_24 {dimension_numbers = #tpu.dot_dimension_numbers<[1], [0], [0], [1], [0, 0, 1, 1], [], []>} : vector<8x8xf32>, vector<8x8xf32>, vector<8x8xf32> -> vector<8x8xf32>
    %c0_25 = arith.constant 0 : index
    %c0_26 = arith.constant 0 : index
    %29 = vector.load %arg12[%c0_25, %c0_26] : memref<1x8xf32, #tpu.memory_space<vmem>>, vector<1x8xf32>
    %30 = vector.broadcast %29 : vector<1x8xf32> to vector<8x8xf32>
    %31 = arith.addf %28, %30 : vector<8x8xf32>
    %32 = math.tanh %31 : vector<8x8xf32>
    %c0_27 = arith.constant 0 : index
    %c0_28 = arith.constant 0 : index
    %33 = vector.load %arg13[%c0_27, %c0_28] : memref<8x1xf32, #tpu.memory_space<vmem>>, vector<8x1xf32>
    %cst_29 = arith.constant dense<0.000000e+00> : vector<8x1xf32>
    %34 = tpu.matmul %32, %33, %cst_29 {dimension_numbers = #tpu.dot_dimension_numbers<[1], [0], [0], [1], [0, 0, 1, 1], [], []>} : vector<8x8xf32>, vector<8x1xf32>, vector<8x1xf32> -> vector<8x1xf32>
    %c0_30 = arith.constant 0 : index
    %c0_31 = arith.constant 0 : index
    %35 = vector.load %arg14[%c0_30, %c0_31] : memref<1x1xf32, #tpu.memory_space<vmem>>, vector<1x1xf32>
    %36 = vector.broadcast %35 : vector<1x1xf32> to vector<8x1xf32>
    %37 = arith.addf %34, %36 : vector<8x1xf32>
    %c0_32 = arith.constant 0 : index
    %c0_33 = arith.constant 0 : index
    %38 = vector.load %arg15[%c0_32, %c0_33] : memref<8x8xf32, #tpu.memory_space<vmem>>, vector<8x8xf32>
    %cst_34 = arith.constant dense<0.000000e+00> : vector<8x8xf32>
    %39 = tpu.matmul %5, %38, %cst_34 {dimension_numbers = #tpu.dot_dimension_numbers<[1], [0], [0], [1], [0, 0, 1, 1], [], []>} : vector<8x8xf32>, vector<8x8xf32>, vector<8x8xf32> -> vector<8x8xf32>
    %c0_35 = arith.constant 0 : index
    %c0_36 = arith.constant 0 : index
    %40 = vector.load %arg16[%c0_35, %c0_36] : memref<1x8xf32, #tpu.memory_space<vmem>>, vector<1x8xf32>
    %41 = vector.broadcast %40 : vector<1x8xf32> to vector<8x8xf32>
    %42 = arith.addf %39, %41 : vector<8x8xf32>
    %43 = math.tanh %42 : vector<8x8xf32>
    %c0_37 = arith.constant 0 : index
    %c0_38 = arith.constant 0 : index
    %44 = vector.load %arg17[%c0_37, %c0_38] : memref<8x1xf32, #tpu.memory_space<vmem>>, vector<8x1xf32>
    %cst_39 = arith.constant dense<0.000000e+00> : vector<8x1xf32>
    %45 = tpu.matmul %43, %44, %cst_39 {dimension_numbers = #tpu.dot_dimension_numbers<[1], [0], [0], [1], [0, 0, 1, 1], [], []>} : vector<8x8xf32>, vector<8x1xf32>, vector<8x1xf32> -> vector<8x1xf32>
    %c0_40 = arith.constant 0 : index
    %c0_41 = arith.constant 0 : index
    %46 = vector.load %arg18[%c0_40, %c0_41] : memref<1x1xf32, #tpu.memory_space<vmem>>, vector<1x1xf32>
    %47 = vector.broadcast %46 : vector<1x1xf32> to vector<8x1xf32>
    %48 = arith.addf %45, %47 : vector<8x1xf32>
    %49 = arith.negf %48 : vector<8x1xf32>
    %50 = math.exp %49 : vector<8x1xf32>
    %cst_42 = arith.constant 1.000000e+00 : f32
    %51 = vector.broadcast %cst_42 : f32 to vector<8x1xf32>
    %52 = arith.addf %51, %50 : vector<8x1xf32>
    %53 = arith.divf %51, %52 : vector<8x1xf32>
    %54 = tpu.concatenate %53, %37 in 1 : vector<8x1xf32>, vector<8x1xf32> -> vector<8x2xf32>
    %c0_43 = arith.constant 0 : index
    %c0_44 = arith.constant 0 : index
    %55 = vector.load %arg19[%c0_43, %c0_44] : memref<8x2xf32, #tpu.memory_space<vmem>>, vector<8x2xf32>
    tpu.vector_store %arg19[%c0_43, %c0_44], %54 {strides = array<i32>} : memref<8x2xf32, #tpu.memory_space<vmem>>, vector<8x2xf32>,
    return
  }
  func.func @transform_0(%arg0: i32) -> (i32, i32) {
    %c0_i32 = arith.constant 0 : i32
    %c0_i32_0 = arith.constant 0 : i32
    return %arg0, %c0_i32 : i32, i32
  }
  func.func @transform_1(%arg0: i32) -> (i32, i32) {
    %c0_i32 = arith.constant 0 : i32
    %c0_i32_0 = arith.constant 0 : i32
    return %arg0, %c0_i32 : i32, i32
  }
  func.func @transform_2(%arg0: i32) -> (i32, i32) {
    %c0_i32 = arith.constant 0 : i32
    %c0_i32_0 = arith.constant 0 : i32
    return %arg0, %c0_i32 : i32, i32
  }
  func.func @transform_3(%arg0: i32) -> (i32, i32) {
    %c0_i32 = arith.constant 0 : i32
    %c0_i32_0 = arith.constant 0 : i32
    %c0_i32_1 = arith.constant 0 : i32
    return %c0_i32, %c0_i32_0 : i32, i32
  }
  func.func @transform_4(%arg0: i32) -> (i32, i32) {
    %c0_i32 = arith.constant 0 : i32
    %c0_i32_0 = arith.constant 0 : i32
    %c0_i32_1 = arith.constant 0 : i32
    return %c0_i32, %c0_i32_0 : i32, i32
  }
  func.func @transform_5(%arg0: i32) -> (i32, i32) {
    %c0_i32 = arith.constant 0 : i32
    %c0_i32_0 = arith.constant 0 : i32
    %c0_i32_1 = arith.constant 0 : i32
    return %c0_i32, %c0_i32_0 : i32, i32
  }
  func.func @transform_6(%arg0: i32) -> (i32, i32) {
    %c0_i32 = arith.constant 0 : i32
    %c0_i32_0 = arith.constant 0 : i32
    %c0_i32_1 = arith.constant 0 : i32
    return %c0_i32, %c0_i32_0 : i32, i32
  }
  func.func @transform_7(%arg0: i32) -> (i32, i32) {
    %c0_i32 = arith.constant 0 : i32
    %c0_i32_0 = arith.constant 0 : i32
    %c0_i32_1 = arith.constant 0 : i32
    return %c0_i32, %c0_i32_0 : i32, i32
  }
  func.func @transform_8(%arg0: i32) -> (i32, i32) {
    %c0_i32 = arith.constant 0 : i32
    %c0_i32_0 = arith.constant 0 : i32
    %c0_i32_1 = arith.constant 0 : i32
    return %c0_i32, %c0_i32_0 : i32, i32
  }
  func.func @transform_9(%arg0: i32) -> (i32, i32) {
    %c0_i32 = arith.constant 0 : i32
    %c0_i32_0 = arith.constant 0 : i32
    %c0_i32_1 = arith.constant 0 : i32
    return %c0_i32, %c0_i32_0 : i32, i32
  }
  func.func @transform_10(%arg0: i32) -> (i32, i32) {
    %c0_i32 = arith.constant 0 : i32
    %c0_i32_0 = arith.constant 0 : i32
    %c0_i32_1 = arith.constant 0 : i32
    return %c0_i32, %c0_i32_0 : i32, i32
  }
  func.func @transform_11(%arg0: i32) -> (i32, i32) {
    %c0_i32 = arith.constant 0 : i32
    %c0_i32_0 = arith.constant 0 : i32
    %c0_i32_1 = arith.constant 0 : i32
    return %c0_i32, %c0_i32_0 : i32, i32
  }
  func.func @transform_12(%arg0: i32) -> (i32, i32) {
    %c0_i32 = arith.constant 0 : i32
    %c0_i32_0 = arith.constant 0 : i32
    %c0_i32_1 = arith.constant 0 : i32
    return %c0_i32, %c0_i32_0 : i32, i32
  }
  func.func @transform_13(%arg0: i32) -> (i32, i32) {
    %c0_i32 = arith.constant 0 : i32
    %c0_i32_0 = arith.constant 0 : i32
    %c0_i32_1 = arith.constant 0 : i32
    return %c0_i32, %c0_i32_0 : i32, i32
  }
  func.func @transform_14(%arg0: i32) -> (i32, i32) {
    %c0_i32 = arith.constant 0 : i32
    %c0_i32_0 = arith.constant 0 : i32
    %c0_i32_1 = arith.constant 0 : i32
    return %c0_i32, %c0_i32_0 : i32, i32
  }
  func.func @transform_15(%arg0: i32) -> (i32, i32) {
    %c0_i32 = arith.constant 0 : i32
    %c0_i32_0 = arith.constant 0 : i32
    %c0_i32_1 = arith.constant 0 : i32
    return %c0_i32, %c0_i32_0 : i32, i32
  }
  func.func @transform_16(%arg0: i32) -> (i32, i32) {
    %c0_i32 = arith.constant 0 : i32
    %c0_i32_0 = arith.constant 0 : i32
    %c0_i32_1 = arith.constant 0 : i32
    return %c0_i32, %c0_i32_0 : i32, i32
  }
  func.func @transform_17(%arg0: i32) -> (i32, i32) {
    %c0_i32 = arith.constant 0 : i32
    %c0_i32_0 = arith.constant 0 : i32
    %c0_i32_1 = arith.constant 0 : i32
    return %c0_i32, %c0_i32_0 : i32, i32
  }
  func.func @transform_18(%arg0: i32) -> (i32, i32) {
    %c0_i32 = arith.constant 0 : i32
    %c0_i32_0 = arith.constant 0 : i32
    return %arg0, %c0_i32 : i32, i32
  }
}

</mosaic_0001>

<llo_original>
// kernel: tpu_custom_call.1
$region0: #{tpu_custom_call.1}
  #allocation0 [shape = 'u32[]', space=smem, size = 0x4, offset = 0x4, fixed_abs, tag = 'smem constant byte address 0x4 - core index']
  #allocation1 [shape = 'u32[72,128]{1,0:T(1,128)}', space=vmem, size = 0x9000, scoped, tag = 'internal scratch']
  #allocation2 [shape = 'f32[1,1]{1,0:T(1,128)S(1)}', space=vmem, size = 0x200, scoped, tag = 'scoped memory for tpu_custom_call.1']
  #allocation3 [shape = 'f32[1,1]{1,0:T(1,128)S(1)}', space=vmem, size = 0x200, scoped, tag = 'scoped memory for tpu_custom_call.1']
  %s0 = inlined_call_operand.vmem [shape: bf16[8,12], index: 0, kind: input, shape index: {}]
  %s1 = inlined_call_operand.vmem [shape: bf16[8,4], index: 1, kind: input, shape index: {}]
  %s2 = inlined_call_operand.hbm [shape: bf16[8,8], index: 2, kind: input, shape index: {}]
  %s3 = inlined_call_operand.vmem [shape: f32[12,8], index: 3, kind: input, shape index: {}]
  %s4 = inlined_call_operand.vmem [shape: f32[4,8], index: 4, kind: input, shape index: {}]
  %s5 = inlined_call_operand.vmem [shape: f32[1,8], index: 5, kind: input, shape index: {}]
  %s6 = inlined_call_operand.vmem [shape: f32[8,8], index: 6, kind: input, shape index: {}]
  %s7 = inlined_call_operand.vmem [shape: f32[1,8], index: 7, kind: input, shape index: {}]
  %s8 = inlined_call_operand.vmem [shape: f32[8,8], index: 8, kind: input, shape index: {}]
  %s9 = inlined_call_operand.vmem [shape: f32[1,8], index: 9, kind: input, shape index: {}]
  %s10 = inlined_call_operand.vmem [shape: f32[8,8], index: 10, kind: input, shape index: {}]
  %s11 = inlined_call_operand.vmem [shape: f32[1,8], index: 11, kind: input, shape index: {}]
  %s12 = inlined_call_operand.vmem [shape: f32[8,1], index: 12, kind: input, shape index: {}]
  %s13 = inlined_call_operand.<no memory space> [shape: f32[1,1], index: 13, kind: input, shape index: {}]
  %s14 = inlined_call_operand.vmem [shape: f32[8,8], index: 14, kind: input, shape index: {}]
  %s15 = inlined_call_operand.vmem [shape: f32[1,8], index: 15, kind: input, shape index: {}]
  %s16 = inlined_call_operand.vmem [shape: f32[8,1], index: 16, kind: input, shape index: {}]
  %s17 = inlined_call_operand.<no memory space> [shape: f32[1,1], index: 17, kind: input, shape index: {}]
  %s18 = inlined_call_operand.vmem [shape: f32[8,2], index: 18, kind: output, shape index: {}]
  %s19 = sld [smem:[#allocation0]]
  $region86: #{tpu_custom_call.1} parent=0
    _
  %s21 = ssub.s32 1, %s19
  %s22 = scalar_select 0, %s21, %s19
  %v23 = vstv %s13
  %24 = vst [vmem:[#allocation2] sm:$0x1] %v23
  %v25 = vstv %s17
  %26 = vst [vmem:[#allocation3] sm:$0x1] %v25
  $region1: #{tpu_custom_call.1} parent=0
    #allocation4 [shape = 'u8[2048]{0}', space=vmem, size = 0x800, scoped, tag = 'input window, operand 2, single buffered']
    #allocation5 [shape = 's32[1]{0}', space=sflag, size = 0x4, scoped, tag = 'scoped memory for tpu_custom_call.1']
    %27 = vsyncpa [#allocation5], 0
    // Predicated region
    $region2: #{tpu_custom_call.1} parent=1 // pred_check
      _
    $region3: #{tpu_custom_call.1} parent=1 // pred_check_branch
      %29 = sbr.rel (0) target = $region5
    $region4: #{tpu_custom_call.1} parent=1 // pred_region
      _
    $region5: #{tpu_custom_call.1} parent=1 // pred_fallthru
      _
    // Predicated region
    $region6: #{tpu_custom_call.1} parent=1 // pred_check
      _
    $region7: #{tpu_custom_call.1} parent=1 // pred_check_branch
      %31 = sbr.rel (0) target = $region9
    $region8: #{tpu_custom_call.1} parent=1 // pred_region
      _
    $region9: #{tpu_custom_call.1} parent=1 // pred_fallthru
      _
    // Predicated region
    $region10: #{tpu_custom_call.1} parent=1 // pred_check
      _
    $region11: #{tpu_custom_call.1} parent=1 // pred_check_branch
      %33 = sbr.rel (0) target = $region13
    $region12: #{tpu_custom_call.1} parent=1 // pred_region
      %35 = vsyncadd [#allocation5], 0
      %s37 = sshll.u32 %s2, 4
      %s38 = int_to_ptr.hbm [resolvable:$true] %s37
      %s39 = sshll.u32 [#allocation4], 4
      %s40 = int_to_ptr.vmem [resolvable:$true] %s39
      %42 = dma.hbm_to_vmem [thread:$0]  %s38, 64, %s40, [#allocation5]
    $region13: #{tpu_custom_call.1} parent=1 // pred_fallthru
      _
    // Predicated region
    $region14: #{tpu_custom_call.1} parent=1 // pred_check
      _
    $region15: #{tpu_custom_call.1} parent=1 // pred_check_branch
      %44 = sbr.rel (0) target = $region17
    $region16: #{tpu_custom_call.1} parent=1 // pred_region
      _
    $region17: #{tpu_custom_call.1} parent=1 // pred_fallthru
      _
    // Predicated region
    $region18: #{tpu_custom_call.1} parent=1 // pred_check
      _
    $region19: #{tpu_custom_call.1} parent=1 // pred_check_branch
      %46 = sbr.rel (0) target = $region21
    $region20: #{tpu_custom_call.1} parent=1 // pred_region
      _
    $region21: #{tpu_custom_call.1} parent=1 // pred_fallthru
      _
    // Predicated region
    $region22: #{tpu_custom_call.1} parent=1 // pred_check
      _
    $region23: #{tpu_custom_call.1} parent=1 // pred_check_branch
      %48 = sbr.rel (0) target = $region25
    $region24: #{tpu_custom_call.1} parent=1 // pred_region
      _
    $region25: #{tpu_custom_call.1} parent=1 // pred_fallthru
      _
    // Predicated region
    $region26: #{tpu_custom_call.1} parent=1 // pred_check
      _
    $region27: #{tpu_custom_call.1} parent=1 // pred_check_branch
      %50 = sbr.rel (0) target = $region29
    $region28: #{tpu_custom_call.1} parent=1 // pred_region
      _
    $region29: #{tpu_custom_call.1} parent=1 // pred_fallthru
      _
    // Predicated region
    $region30: #{tpu_custom_call.1} parent=1 // pred_check
      _
    $region31: #{tpu_custom_call.1} parent=1 // pred_check_branch
      %52 = sbr.rel (0) target = $region33
    $region32: #{tpu_custom_call.1} parent=1 // pred_region
      _
    $region33: #{tpu_custom_call.1} parent=1 // pred_fallthru
      _
    // Predicated region
    $region34: #{tpu_custom_call.1} parent=1 // pred_check
      _
    $region35: #{tpu_custom_call.1} parent=1 // pred_check_branch
      %54 = sbr.rel (0) target = $region37
    $region36: #{tpu_custom_call.1} parent=1 // pred_region
      _
    $region37: #{tpu_custom_call.1} parent=1 // pred_fallthru
      _
    // Predicated region
    $region38: #{tpu_custom_call.1} parent=1 // pred_check
      _
    $region39: #{tpu_custom_call.1} parent=1 // pred_check_branch
      %56 = sbr.rel (0) target = $region41
    $region40: #{tpu_custom_call.1} parent=1 // pred_region
      _
    $region41: #{tpu_custom_call.1} parent=1 // pred_fallthru
      _
    // Predicated region
    $region42: #{tpu_custom_call.1} parent=1 // pred_check
      _
    $region43: #{tpu_custom_call.1} parent=1 // pred_check_branch
      %58 = sbr.rel (0) target = $region45
    $region44: #{tpu_custom_call.1} parent=1 // pred_region
      _
    $region45: #{tpu_custom_call.1} parent=1 // pred_fallthru
      _
    // Predicated region
    $region46: #{tpu_custom_call.1} parent=1 // pred_check
      _
    $region47: #{tpu_custom_call.1} parent=1 // pred_check_branch
      %60 = sbr.rel (0) target = $region49
    $region48: #{tpu_custom_call.1} parent=1 // pred_region
      _
    $region49: #{tpu_custom_call.1} parent=1 // pred_fallthru
      _
    // Predicated region
    $region50: #{tpu_custom_call.1} parent=1 // pred_check
      _
    $region51: #{tpu_custom_call.1} parent=1 // pred_check_branch
      %62 = sbr.rel (0) target = $region53
    $region52: #{tpu_custom_call.1} parent=1 // pred_region
      _
    $region53: #{tpu_custom_call.1} parent=1 // pred_fallthru
      _
    // Predicated region
    $region54: #{tpu_custom_call.1} parent=1 // pred_check
      _
    $region55: #{tpu_custom_call.1} parent=1 // pred_check_branch
      %64 = sbr.rel (0) target = $region57
    $region56: #{tpu_custom_call.1} parent=1 // pred_region
      _
    $region57: #{tpu_custom_call.1} parent=1 // pred_fallthru
      _
    // Predicated region
    $region58: #{tpu_custom_call.1} parent=1 // pred_check
      _
    $region59: #{tpu_custom_call.1} parent=1 // pred_check_branch
      %66 = sbr.rel (0) target = $region61
    $region60: #{tpu_custom_call.1} parent=1 // pred_region
      _
    $region61: #{tpu_custom_call.1} parent=1 // pred_fallthru
      _
    // Predicated region
    $region62: #{tpu_custom_call.1} parent=1 // pred_check
      _
    $region63: #{tpu_custom_call.1} parent=1 // pred_check_branch
      %68 = sbr.rel (0) target = $region65
    $region64: #{tpu_custom_call.1} parent=1 // pred_region
      _
    $region65: #{tpu_custom_call.1} parent=1 // pred_fallthru
      _
    // Predicated region
    $region66: #{tpu_custom_call.1} parent=1 // pred_check
      _
    $region67: #{tpu_custom_call.1} parent=1 // pred_check_branch
      %70 = sbr.rel (0) target = $region69
    $region68: #{tpu_custom_call.1} parent=1 // pred_region
      _
    $region69: #{tpu_custom_call.1} parent=1 // pred_fallthru
      _
    // Predicated region
    $region70: #{tpu_custom_call.1} parent=1 // pred_check
      _
    $region71: #{tpu_custom_call.1} parent=1 // pred_check_branch
      %72 = sbr.rel (0) target = $region73
    $region72: #{tpu_custom_call.1} parent=1 // pred_region
      _
    $region73: #{tpu_custom_call.1} parent=1 // pred_fallthru
      _
    // Predicated region
    $region74: #{tpu_custom_call.1} parent=1 // pred_check
      _
    $region75: #{tpu_custom_call.1} parent=1 // pred_check_branch
      %74 = sbr.rel (0) target = $region77
    $region76: #{tpu_custom_call.1} parent=1 // pred_region
      %76 = dma.done [#allocation5], 64
    $region77: #{tpu_custom_call.1} parent=1 // pred_fallthru
      _
    %v77 = vld [vmem:[%s0] sm:$0xf]
    %v78 = vunpack.c.l.bf16 %v77
    %v79 = vld [vmem:[%s1] sm:$0xf]
    %v80 = vunpack.c.l.bf16 %v79
    %v81 = vld [vmem:[#allocation4] sm:$0xf]
    %v82 = vunpack.c.l.bf16 %v81
    %v83 = vld [vmem:[%s3] sm:$0xff]
    %v84 = vld [vmem:[%s3 + $0x8] sm:$0xf]
    %v85 = vld [vmem:[%s4] sm:$0xf]
    %vm86 = vcmask 31744
    %v88 = vsel %vm86, %v80, 0
    %vm90 = vcmask 1043456
    %v92 = vsel %vm90, %v85, 0
    %94 = vmatpush.msra.mxu0 0.0
    %95 = vmatpush.msra.mxu0 0.0
    %96 = vmatpush.msra.mxu0 0.0
    %97 = vmatpush.msra.mxu0 0.0
    %98 = vmatpush.msra.mxu0 0.0
    %99 = vmatpush.msra.mxu0 0.0
    %100 = vmatpush.msra.mxu0 0.0
    %101 = vmatpush.msra.mxu0 0.0
    %102 = vmatpush.msra.mxu0 0.0
    %103 = vmatpush.msra.mxu0 0.0
    %104 = vmatpush.msra.mxu0 0.0
    %105 = vmatpush.msra.mxu0 0.0
    %106 = vmatpush.msra.mxu0 0.0
    %107 = vmatpush.msra.mxu0 0.0
    %108 = vmatpush.msra.mxu0 0.0
    %109 = vmatpush.msra.mxu0 %v92
    %110 = vmatmul.f32.gmra.mxu0 %v88
    %v111 = vpop.f32.mrf.mxu0
    %v112 = vadd.f32 0.0, %v111
    %113 = vdwg.mxu0
    %vm114 = vcmask 97280
    %v116 = vsel %vm114, %v78, 0
    %v119 = vsel %vm90, %v84, 0
    %121 = vmatpush.msra.mxu0 0.0
    %122 = vmatpush.msra.mxu0 0.0
    %123 = vmatpush.msra.mxu0 0.0
    %124 = vmatpush.msra.mxu0 0.0
    %125 = vmatpush.msra.mxu0 0.0
    %126 = vmatpush.msra.mxu0 0.0
    %127 = vmatpush.msra.mxu0 0.0
    %128 = vmatpush.msra.mxu0 0.0
    %129 = vmatpush.msra.mxu0 0.0
    %130 = vmatpush.msra.mxu0 0.0
    %131 = vmatpush.msra.mxu0 0.0
    %132 = vmatpush.msra.mxu0 0.0
    %133 = vmatpush.msra.mxu0 0.0
    %134 = vmatpush.msra.mxu0 0.0
    %135 = vmatpush.msra.mxu0 %v119
    %136 = vmatpush.msra.mxu0 %v83
    %137 = vmatmul.f32.gmra.mxu0 %v116
    %v138 = vpop.f32.mrf.mxu0
    %v139 = vadd.f32 %v112, %v138
    %140 = vdwg.mxu0
    %v141 = vld [vmem:[%s5] sm:$0x1]
    %v143 = vperm.slane %v141, 0
    %v145 = vadd.f32 %v139, %v143
    %v146 = vtanh.pop %v145
    %v147 = vld [vmem:[%s6] sm:$0xff]
    %v148 = vld [vmem:[%s7] sm:$0x1]
    %v150 = vperm.slane %v148, 0
    %vm152 = vcmask 64512
    %v154 = vsel %vm152, %v146, 0
    %156 = vmatpush.msra.mxu0 0.0
    %157 = vmatpush.msra.mxu0 0.0
    %158 = vmatpush.msra.mxu0 0.0
    %159 = vmatpush.msra.mxu0 0.0
    %160 = vmatpush.msra.mxu0 0.0
    %161 = vmatpush.msra.mxu0 0.0
    %162 = vmatpush.msra.mxu0 0.0
    %163 = vmatpush.msra.mxu0 0.0
    %164 = vmatpush.msra.mxu0 0.0
    %165 = vmatpush.msra.mxu0 0.0
    %166 = vmatpush.msra.mxu0 0.0
    %167 = vmatpush.msra.mxu0 0.0
    %168 = vmatpush.msra.mxu0 0.0
    %169 = vmatpush.msra.mxu0 0.0
    %170 = vmatpush.msra.mxu0 0.0
    %171 = vmatpush.msra.mxu0 %v147
    %172 = vmatmul.f32.gmra.mxu0 %v154
    %v173 = vpop.f32.mrf.mxu0
    %v174 = vadd.f32 %v150, %v173
    %175 = vdwg.mxu0
    %v176 = vtanh.pop %v174
    %v177 = vld [vmem:[%s8] sm:$0xff]
    %v178 = vld [vmem:[%s9] sm:$0x1]
    %v180 = vperm.slane %v178, 0
    %v183 = vsel %vm152, %v176, 0
    %185 = vmatpush.msra.mxu0 0.0
    %186 = vmatpush.msra.mxu0 0.0
    %187 = vmatpush.msra.mxu0 0.0
    %188 = vmatpush.msra.mxu0 0.0
    %189 = vmatpush.msra.mxu0 0.0
    %190 = vmatpush.msra.mxu0 0.0
    %191 = vmatpush.msra.mxu0 0.0
    %192 = vmatpush.msra.mxu0 0.0
    %193 = vmatpush.msra.mxu0 0.0
    %194 = vmatpush.msra.mxu0 0.0
    %195 = vmatpush.msra.mxu0 0.0
    %196 = vmatpush.msra.mxu0 0.0
    %197 = vmatpush.msra.mxu0 0.0
    %198 = vmatpush.msra.mxu0 0.0
    %199 = vmatpush.msra.mxu0 0.0
    %200 = vmatpush.msra.mxu0 %v177
    %201 = vmatmul.f32.gmra.mxu0 %v183
    %v202 = vpop.f32.mrf.mxu0
    %v203 = vadd.f32 %v180, %v202
    %204 = vdwg.mxu0
    %v205 = vtanh.pop %v203
    %v206 = vld [vmem:[%s10] sm:$0xff]
    %v207 = vld [vmem:[%s11] sm:$0x1]
    %v209 = vperm.slane %v207, 0
    %v212 = vsel %vm152, %v205, 0
    %214 = vmatpush.msra.mxu0 0.0
    %215 = vmatpush.msra.mxu0 0.0
    %216 = vmatpush.msra.mxu0 0.0
    %217 = vmatpush.msra.mxu0 0.0
    %218 = vmatpush.msra.mxu0 0.0
    %219 = vmatpush.msra.mxu0 0.0
    %220 = vmatpush.msra.mxu0 0.0
    %221 = vmatpush.msra.mxu0 0.0
    %222 = vmatpush.msra.mxu0 0.0
    %223 = vmatpush.msra.mxu0 0.0
    %224 = vmatpush.msra.mxu0 0.0
    %225 = vmatpush.msra.mxu0 0.0
    %226 = vmatpush.msra.mxu0 0.0
    %227 = vmatpush.msra.mxu0 0.0
    %228 = vmatpush.msra.mxu0 0.0
    %229 = vmatpush.msra.mxu0 %v206
    %230 = vmatmul.f32.gmra.mxu0 %v212
    %v231 = vpop.f32.mrf.mxu0
    %v232 = vadd.f32 %v209, %v231
    %233 = vdwg.mxu0
    %v234 = vtanh.pop %v232
    %v235 = vld [vmem:[%s12] sm:$0xff]
    %v236 = vld [vmem:[#allocation2] sm:$0x1]
    %v238 = vperm.slane %v236, 0
    %v241 = vsel %vm152, %v234, 0
    %243 = vmatpush.msra.mxu0 0.0
    %244 = vmatpush.msra.mxu0 0.0
    %245 = vmatpush.msra.mxu0 0.0
    %246 = vmatpush.msra.mxu0 0.0
    %247 = vmatpush.msra.mxu0 0.0
    %248 = vmatpush.msra.mxu0 0.0
    %249 = vmatpush.msra.mxu0 0.0
    %250 = vmatpush.msra.mxu0 0.0
    %251 = vmatpush.msra.mxu0 0.0
    %252 = vmatpush.msra.mxu0 0.0
    %253 = vmatpush.msra.mxu0 0.0
    %254 = vmatpush.msra.mxu0 0.0
    %255 = vmatpush.msra.mxu0 0.0
    %256 = vmatpush.msra.mxu0 0.0
    %257 = vmatpush.msra.mxu0 0.0
    %258 = vmatpush.msra.mxu0 %v235
    %259 = vmatmul.f32.gmra.mxu0 %v241
    %v260 = vpop.f32.mrf.mxu0
    %v261 = vadd.f32 %v238, %v260
    %262 = vdwg.mxu0
    %v263 = vld [vmem:[%s14] sm:$0xff]
    %v264 = vld [vmem:[%s15] sm:$0x1]
    %v266 = vperm.slane %v264, 0
    %v269 = vsel %vm152, %v82, 0
    %271 = vmatpush.msra.mxu0 0.0
    %272 = vmatpush.msra.mxu0 0.0
    %273 = vmatpush.msra.mxu0 0.0
    %274 = vmatpush.msra.mxu0 0.0
    %275 = vmatpush.msra.mxu0 0.0
    %276 = vmatpush.msra.mxu0 0.0
    %277 = vmatpush.msra.mxu0 0.0
    %278 = vmatpush.msra.mxu0 0.0
    %279 = vmatpush.msra.mxu0 0.0
    %280 = vmatpush.msra.mxu0 0.0
    %281 = vmatpush.msra.mxu0 0.0
    %282 = vmatpush.msra.mxu0 0.0
    %283 = vmatpush.msra.mxu0 0.0
    %284 = vmatpush.msra.mxu0 0.0
    %285 = vmatpush.msra.mxu0 0.0
    %286 = vmatpush.msra.mxu0 %v263
    %287 = vmatmul.f32.gmra.mxu0 %v269
    %v288 = vpop.f32.mrf.mxu0
    %v289 = vadd.f32 %v266, %v288
    %290 = vdwg.mxu0
    %v291 = vtanh.pop %v289
    %v292 = vld [vmem:[%s16] sm:$0xff]
    %v293 = vld [vmem:[#allocation3] sm:$0x1]
    %v295 = vperm.slane %v293, 0
    %v298 = vsel %vm152, %v291, 0
    %300 = vmatpush.msra.mxu0 0.0
    %301 = vmatpush.msra.mxu0 0.0
    %302 = vmatpush.msra.mxu0 0.0
    %303 = vmatpush.msra.mxu0 0.0
    %304 = vmatpush.msra.mxu0 0.0
    %305 = vmatpush.msra.mxu0 0.0
    %306 = vmatpush.msra.mxu0 0.0
    %307 = vmatpush.msra.mxu0 0.0
    %308 = vmatpush.msra.mxu0 0.0
    %309 = vmatpush.msra.mxu0 0.0
    %310 = vmatpush.msra.mxu0 0.0
    %311 = vmatpush.msra.mxu0 0.0
    %312 = vmatpush.msra.mxu0 0.0
    %313 = vmatpush.msra.mxu0 0.0
    %314 = vmatpush.msra.mxu0 0.0
    %315 = vmatpush.msra.mxu0 %v292
    %316 = vmatmul.f32.gmra.mxu0 %v298
    %v317 = vpop.f32.mrf.mxu0
    %v318 = vadd.f32 %v295, %v317
    %319 = vdwg.mxu0
    %v320 = vxor.u32 %v318, 2147483648
    %v321 = vmul.f32 %v320, 1.442695
    %v322 = vpow.pop %v321
    %v323 = vadd.f32 %v322, 1.0
    %v324 = vrcp.pop %v323
    %v325 = vmul.f32 %v323, %v324
    %v326 = vsub.f32 1.0, %v325
    %v327 = vmul.f32 %v324, %v326
    %v328 = vadd.f32 %v324, %v327
    %vm329 = vweird.f32 %v323
    %vm330 = vweird.f32 %v324
    %vm331 = vmor %vm329, %vm330
    %v332 = vsel %vm331, %v324, %v328
    %v333 = vand.u32 2147483647, %v323
    %vm334 = vcmp.eq.f32.partialorder %v333, 8.507059e+37
    %v335 = vand.u32 %v323, 2147483648
    %v336 = vor.u32 1.1754944e-38, %v335
    %v337 = vsel %vm334, %v336, %v332
    %v338 = vmul.f32 1.0, %v337
    %340 = vrot.lane.b32.xlu0 %v261, 1
    %v341 = vpop.permute.xlu0 %340
    %vm343 = vcmask 7168
    %v344 = vsel %vm343, %v338, %v341
    %vm345 = vcmask 15360
    %346 = vst.msk [vmem:[%s18] sm:$0xff] %vm345, %v344
    // Predicated region
    $region78: #{tpu_custom_call.1} parent=1 // pred_check
      _
    $region79: #{tpu_custom_call.1} parent=1 // pred_check_branch
      %348 = sbr.rel (0) target = $region81
    $region80: #{tpu_custom_call.1} parent=1 // pred_region
      _
    $region81: #{tpu_custom_call.1} parent=1 // pred_fallthru
      _
    // Predicated region
    $region82: #{tpu_custom_call.1} parent=1 // pred_check
      _
    $region83: #{tpu_custom_call.1} parent=1 // pred_check_branch
      %350 = sbr.rel (0) target = $region85
    $region84: #{tpu_custom_call.1} parent=1 // pred_region
      _
    $region85: #{tpu_custom_call.1} parent=1 // pred_fallthru
      _
    %351 = vsyncpa [#allocation5], 1

</llo_original>
